<compile_context>
chip_gen: v7x
topology: tpu7x:2x2x1
jax: 0.10.0
libtpu: 0.0.40
codegen_flags: <defaults>
</compile_context>

<pallas_src>
import jax
import jax.numpy as jnp
from jax.experimental import pallas as pl
from jax.experimental.pallas import tpu as pltpu

LANE = 128
SUBLANE = 8
MAX_LANE_WIDTH = 2048            # cap on lane-dense slab width
TARGET_TILE_BYTES = 4 << 20      # ~4 MiB per array per block
SMALL_N = SUBLANE * LANE         # <= 1024 elements: single-block path
MEGACORE_SPLIT_BYTES = 2 << 20   # slab larger than this -> force >= 2 programs


def add_kernel(x_ref, y_ref, o_ref):
    # Whole tile resident in VMEM; single VPU elementwise add.
    o_ref[...] = x_ref[...] + y_ref[...]


def _add_single_block(x, y):
    """One program, block = full array (legal even below (8,128))."""
    ndim = x.ndim
    spec = pl.BlockSpec(x.shape, lambda *_: (0,) * ndim)
    return pl.pallas_call(
        add_kernel,
        out_shape=jax.ShapeDtypeStruct(x.shape, x.dtype),
        in_specs=[spec, spec],
        out_specs=spec,
    )(x, y)


def _round_up(v, m):
    return (v + m - 1) // m * m


def _pick_lane_width(n):
    """Largest multiple of LANE that divides n, capped at MAX_LANE_WIDTH."""
    lw = MAX_LANE_WIDTH
    while lw > LANE and n % lw != 0:
        lw -= LANE
    return lw


def _add_tiled_flat(xf, yf):
    """xf/yf are flat 1-D arrays whose size is a multiple of LANE."""
    n = xf.size
    itemsize = xf.dtype.itemsize

    lane_width = _pick_lane_width(n)
    rows = n // lane_width
    slab_bytes = n * itemsize

    if rows <= SUBLANE:
        # Tiny slab: one full-extent block (always a legal block shape).
        br = rows
    else:
        # block_rows from the per-array tile-byte budget, sublane-aligned.
        br = TARGET_TILE_BYTES // (lane_width * itemsize)
        br = max(SUBLANE, (br // SUBLANE) * SUBLANE)
        if slab_bytes > MEGACORE_SPLIT_BYTES:
            # Ensure >= 2 programs so v7x's two TensorCores share the HBM
            # traffic (dimension_semantics=("parallel",) does the sharding).
            half = _round_up(pl.cdiv(rows, 2), SUBLANE)
            br = min(br, half)
        if br >= rows:
            br = rows  # single full-extent block
        # Invariant: br == rows (full extent) or br % SUBLANE == 0 -> legal.

    grid = (pl.cdiv(rows, br),)
    tile_bytes = br * lane_width * itemsize
    # Explicit VMEM budget: 3 arrays x 2 buffers x tile + headroom.
    # Tile is capped at ~4 MiB, so this stays well under v7x's 64 MiB physical.
    vmem_limit = int(min(48 << 20, 6 * tile_bytes + (8 << 20)))

    xs = xf.reshape(rows, lane_width)
    ys = yf.reshape(rows, lane_width)

    spec = pl.BlockSpec((br, lane_width), lambda i: (i, 0))
    out2d = pl.pallas_call(
        add_kernel,
        out_shape=jax.ShapeDtypeStruct((rows, lane_width), xf.dtype),
        grid=grid,
        in_specs=[spec, spec],
        out_specs=spec,
        compiler_params=pltpu.CompilerParams(
            dimension_semantics=("parallel",),
            vmem_limit_bytes=vmem_limit,
        ),
        cost_estimate=pl.CostEstimate(
            flops=n,
            transcendentals=0,
            bytes_accessed=3 * n * itemsize,
        ),
    )(xs, ys)
    return out2d.reshape(n)


def pallas_add(x, y):
    assert x.shape == y.shape and x.dtype == y.dtype
    n = x.size
    if n <= SMALL_N:
        # Tiny input (e.g. the module's (2, 2) case): pure launch overhead,
        # no tiling win possible.
        return _add_single_block(x, y)

    orig_shape = x.shape
    xf = x.reshape(-1)
    yf = y.reshape(-1)
    n_pad = _round_up(n, LANE)
    if n_pad != n:
        # Ragged size: pad flat to a multiple of 128 so the lane-dense tiled
        # pipeline applies; slice the padding back off afterwards.
        pad = n_pad - n
        xf = jnp.pad(xf, (0, pad))
        yf = jnp.pad(yf, (0, pad))
    out_flat = _add_tiled_flat(xf, yf)
    if n_pad != n:
        out_flat = out_flat[:n]
    return out_flat.reshape(orig_shape)


if __name__ == "__main__":
    key = jax.random.PRNGKey(0)
    kx, ky, ka, kb, kc, kd = jax.random.split(key, 6)

    # Matches ModuleAdd.get_random_inputs(): two (2, 2) float32 tensors.
    x = jax.random.normal(kx, (2, 2), dtype=jnp.float32)
    y = jax.random.normal(ky, (2, 2), dtype=jnp.float32)
    out = pallas_add(x, y)
    jax.block_until_ready(out)
    assert jnp.allclose(out, x + y, atol=1e-6, rtol=1e-6), "mismatch (small path)"

    # Tiled, lane-dense path (grid >= 2 programs, 1024-wide slab).
    a = jax.random.normal(ka, (512, 1024), dtype=jnp.float32)
    b = jax.random.normal(kb, (512, 1024), dtype=jnp.float32)
    out2 = pallas_add(a, b)
    jax.block_until_ready(out2)
    assert jnp.allclose(out2, a + b, atol=1e-6, rtol=1e-6), "mismatch (tiled path)"

    # Ragged size (not a multiple of 128): padded tiled path.
    c = jax.random.normal(kc, (1000, 300), dtype=jnp.float32)
    d = jax.random.normal(kd, (1000, 300), dtype=jnp.float32)
    out3 = pallas_add(c, d)
    jax.block_until_ready(out3)
    assert jnp.allclose(out3, c + d, atol=1e-6, rtol=1e-6), "mismatch (padded path)"

    print("KERNEL_OK")
</pallas_src>

<mosaic_0001>
module attributes {stable_mosaic.version = 11 : i64} {
  func.func @add_kernel(%arg0: memref<2x2xf32, #tpu.memory_space<vmem>>, %arg1: memref<2x2xf32, #tpu.memory_space<vmem>>, %arg2: memref<2x2xf32, #tpu.memory_space<vmem>>) attributes {dimension_semantics = [], scalar_prefetch = 0 : i64, scratch_operands = 0 : i64, tpu.core_type = #tpu.core_type<tc>} {
    %c0 = arith.constant 0 : index
    %c0_0 = arith.constant 0 : index
    %0 = vector.load %arg0[%c0, %c0_0] : memref<2x2xf32, #tpu.memory_space<vmem>>, vector<2x2xf32>
    %c0_1 = arith.constant 0 : index
    %c0_2 = arith.constant 0 : index
    %1 = vector.load %arg1[%c0_1, %c0_2] : memref<2x2xf32, #tpu.memory_space<vmem>>, vector<2x2xf32>
    %2 = arith.addf %0, %1 : vector<2x2xf32>
    %c0_3 = arith.constant 0 : index
    %c0_4 = arith.constant 0 : index
    %3 = vector.load %arg2[%c0_3, %c0_4] : memref<2x2xf32, #tpu.memory_space<vmem>>, vector<2x2xf32>
    tpu.vector_store %arg2[%c0_3, %c0_4], %2 {strides = array<i32>} : memref<2x2xf32, #tpu.memory_space<vmem>>, vector<2x2xf32>,
    return
  }
}

</mosaic_0001>

<llo_original>
// kernel: tpu_custom_call.1
$region0: #{tpu_custom_call.1}
  #allocation0 [shape = 'u32[]', space=smem, size = 0x4, offset = 0x4, fixed_abs, tag = 'smem constant byte address 0x4 - core index']
  #allocation1 [shape = 'u32[144,128]{1,0:T(1,128)}', space=vmem, size = 0x12000, scoped, tag = 'internal scratch']
  %s0 = inlined_call_operand.hbm [shape: f32[2,2], index: 0, kind: input, shape index: {}]
  %s1 = inlined_call_operand.vmem [shape: f32[2,2], index: 1, kind: input, shape index: {}]
  %s2 = inlined_call_operand.hbm [shape: f32[2,2], index: 2, kind: output, shape index: {}]
  %s3 = sld [smem:[#allocation0]]
  $region22: #{tpu_custom_call.1} parent=0
    _
  %s5 = ssub.s32 1, %s3
  %s6 = scalar_select 0, %s5, %s3
  $region1: #{tpu_custom_call.1} parent=0
    #allocation2 [shape = 'u8[1024]{0}', space=vmem, size = 0x400, scoped, tag = 'input window, operand 0, single buffered']
    #allocation3 [shape = 's32[1]{0}', space=sflag, size = 0x4, scoped, tag = 'scoped memory for tpu_custom_call.1']
    #allocation4 [shape = 's32[1]{0}', space=sflag, size = 0x4, scoped, tag = 'scoped memory for tpu_custom_call.1']
    #allocation5 [shape = 'u8[1024]{0}', space=vmem, size = 0x400, scoped, tag = 'output window, operand 0, single buffered']
    %7 = vsyncpa [#allocation3], 0
    %8 = vsyncpa [#allocation4], 0
    // Predicated region
    $region2: #{tpu_custom_call.1} parent=1 // pred_check
      _
    $region3: #{tpu_custom_call.1} parent=1 // pred_check_branch
      %10 = sbr.rel (0) target = $region5
    $region4: #{tpu_custom_call.1} parent=1 // pred_region
      %s12 = ssub.s32 32, 32
      %13 = vsyncadd [#allocation3], %s12
      %s15 = sshll.u32 [#allocation2], 4
      %s16 = int_to_ptr.vmem [resolvable:$true] %s15
      %18 = dma.hbm_to_vmem [thread:$0]  %s0, 32, %s16, [#allocation3]
    $region5: #{tpu_custom_call.1} parent=1 // pred_fallthru
      _
    // Predicated region
    $region6: #{tpu_custom_call.1} parent=1 // pred_check
      _
    $region7: #{tpu_custom_call.1} parent=1 // pred_check_branch
      %20 = sbr.rel (0) target = $region9
    $region8: #{tpu_custom_call.1} parent=1 // pred_region
      _
    $region9: #{tpu_custom_call.1} parent=1 // pred_fallthru
      _
    // Predicated region
    $region10: #{tpu_custom_call.1} parent=1 // pred_check
      _
    $region11: #{tpu_custom_call.1} parent=1 // pred_check_branch
      %22 = sbr.rel (0) target = $region13
    $region12: #{tpu_custom_call.1} parent=1 // pred_region
      %23 = dma.done [#allocation3], 32
    $region13: #{tpu_custom_call.1} parent=1 // pred_fallthru
      _
    %v24 = vld [vmem:[#allocation2] sm:$0x3]
    %v25 = vld [vmem:[%s1] sm:$0x3]
    %v26 = vadd.f32 %v24, %v25
    %vm27 = vcmask 9216
    %28 = vst.msk [vmem:[#allocation5] sm:$0x3] %vm27, %v26
    // Predicated region
    $region14: #{tpu_custom_call.1} parent=1 // pred_check
      _
    $region15: #{tpu_custom_call.1} parent=1 // pred_check_branch
      %30 = sbr.rel (0) target = $region17
    $region16: #{tpu_custom_call.1} parent=1 // pred_region
      %s32 = ssub.s32 32, 32
      %33 = vsyncadd [#allocation4], %s32
      %s35 = sshll.u32 [#allocation5], 4
      %s36 = int_to_ptr.vmem [resolvable:$true] %s35
      %38 = dma.vmem_to_hbm [thread:$0]  %s36, 32, %s2, [#allocation4]
    $region17: #{tpu_custom_call.1} parent=1 // pred_fallthru
      _
    // Predicated region
    $region18: #{tpu_custom_call.1} parent=1 // pred_check
      _
    $region19: #{tpu_custom_call.1} parent=1 // pred_check_branch
      %40 = sbr.rel (0) target = $region21
    $region20: #{tpu_custom_call.1} parent=1 // pred_region
      %41 = dma.done [#allocation4], 32
    $region21: #{tpu_custom_call.1} parent=1 // pred_fallthru
      _
    %42 = vsyncpa [#allocation3], 1
    %43 = vsyncpa [#allocation4], 1

</llo_original>
